<compile_context>
chip_gen: v6e
topology: v6e:2x2x1
jax: 0.10.0
libtpu: 0.0.40
codegen_flags: <defaults>
</compile_context>

<pallas_src>
import jax
import jax.numpy as jnp
from jax import lax
from jax.experimental import pallas as pl
from jax.experimental.pallas import tpu as pltpu


# ---------------------------------------------------------------------------
# Kernels
# ---------------------------------------------------------------------------
def _linear_yt_kernel(x_ref, w_ref, yt_ref):
    # y^T tile = W @ x_tile^T : contract n_x (last dim of both) -> (n_y, TB).
    yt_ref[...] = lax.dot_general(
        w_ref[...], x_ref[...],
        dimension_numbers=(((1,), (1,)), ((), ())),
        preferred_element_type=jnp.float32,
    ).astype(yt_ref.dtype)


def _linear_yt_bias_kernel(x_ref, w_ref, b_ref, yt_ref):
    acc = lax.dot_general(
        w_ref[...], x_ref[...],
        dimension_numbers=(((1,), (1,)), ((), ())),
        preferred_element_type=jnp.float32,
    )
    yt_ref[...] = (acc + b_ref[...]).astype(yt_ref.dtype)  # b: (n_y, 1), f32


def _linear_y_kernel(x_ref, w_ref, y_ref):
    # y tile = x_tile @ W^T : contract n_x (last dim of both) -> (TB, n_y).
    y_ref[...] = lax.dot_general(
        x_ref[...], w_ref[...],
        dimension_numbers=(((1,), (1,)), ((), ())),
        preferred_element_type=jnp.float32,
    ).astype(y_ref.dtype)


def _linear_y_bias_kernel(x_ref, w_ref, b_ref, y_ref):
    acc = lax.dot_general(
        x_ref[...], w_ref[...],
        dimension_numbers=(((1,), (1,)), ((), ())),
        preferred_element_type=jnp.float32,
    )
    y_ref[...] = (acc + b_ref[...]).astype(y_ref.dtype)    # b: (1, n_y), f32


# ---------------------------------------------------------------------------
# Helpers
# ---------------------------------------------------------------------------
def _resident_spec(block_shape, index_map, single_buffer):
    """Constant-index operand: keep it resident; 1 buffer when supported."""
    if single_buffer:
        return pl.BlockSpec(block_shape, index_map, pipeline_mode=pl.Buffered(1))
    return pl.BlockSpec(block_shape, index_map)


def _choose_tb(B, block_b, align):
    """Batch-rows per grid step, aligned so BlockSpecs always lower."""
    tb = 512 if block_b is None else int(block_b)
    if tb >= B:
        return B                                  # single step, full-dim block
    tb = max(align, (tb // align) * align)        # (8,128) divisibility rule
    return B if tb >= B else tb


# ---------------------------------------------------------------------------
# Forward
# ---------------------------------------------------------------------------
def linear_output_forward(x, weight, bias=None, *, block_b=None,
                          compute_dtype=None):
    """LinearOutput forward: y = x @ weight.T (+ bias).

    x      : [..., n_x]   (leading dims flattened to a batch axis)
    weight : [n_y, n_x]   (native PyTorch nn.Linear layout, used untransposed)
    bias   : optional [n_y]  (module default is bias=False)
    block_b: batch rows per grid step (None -> auto)
    compute_dtype: optional MXU input dtype (e.g. jnp.bfloat16); accumulation,
        bias add and the reference semantics stay in f32 by default.
    """
    orig_shape = x.shape
    n_x = orig_shape[-1]
    n_y, n_x_w = weight.shape
    assert n_x_w == n_x, "weight must have shape [n_y, n_x]"
    out_dtype = x.dtype

    x2 = x.reshape(-1, n_x)
    B = x2.shape[0]

    if compute_dtype is not None:
        x2 = x2.astype(compute_dtype)
        weight = weight.astype(compute_dtype)

    # Small-n_y path: write the transposed product so the output tile's lane
    # dim is TB (>=128, dense) instead of n_y (masked partial stores).
    transposed_out = n_y < 128
    align = 128 if transposed_out else 8
    tb = _choose_tb(B, block_b, align)
    grid = (pl.cdiv(B, tb),)

    # VMEM budget: double-buffered x/y stream tiles + (conservatively 2x)
    # resident weight + headroom; clamped so it is valid on v7x (64 MiB).
    in_isz = x2.dtype.itemsize
    out_isz = jnp.dtype(out_dtype).itemsize
    w_bytes = n_y * n_x * weight.dtype.itemsize
    stream_bytes = 2 * tb * (n_x * in_isz + n_y * out_isz)
    vmem_limit = int(min(max(stream_bytes + 2 * w_bytes + (4 << 20), 16 << 20),
                         64 << 20))

    cost = pl.CostEstimate(
        flops=2 * B * n_x * n_y,
        transcendentals=0,
        bytes_accessed=B * n_x * in_isz + B * n_y * out_isz + w_bytes,
    )
    cparams = pltpu.CompilerParams(
        dimension_semantics=("parallel",),      # shard batch steps across TCs
        vmem_limit_bytes=vmem_limit,
    )

    x_spec = pl.BlockSpec((tb, n_x), lambda i: (i, 0))

    def _run(single_buffer):
        w_spec = _resident_spec((n_y, n_x), lambda i: (0, 0), single_buffer)
        if transposed_out:
            out_shape = jax.ShapeDtypeStruct((n_y, B), out_dtype)
            y_spec = pl.BlockSpec((n_y, tb), lambda i: (0, i))
            if bias is None:
                kernel, in_specs, args = _linear_yt_kernel, [x_spec, w_spec], (x2, weight)
            else:
                b2 = bias.astype(jnp.float32).reshape(n_y, 1)
                kernel = _linear_yt_bias_kernel
                in_specs = [x_spec, w_spec,
                            _resident_spec((n_y, 1), lambda i: (0, 0), single_buffer)]
                args = (x2, weight, b2)
        else:
            out_shape = jax.ShapeDtypeStruct((B, n_y), out_dtype)
            y_spec = pl.BlockSpec((tb, n_y), lambda i: (i, 0))
            if bias is None:
                kernel, in_specs, args = _linear_y_kernel, [x_spec, w_spec], (x2, weight)
            else:
                b2 = bias.astype(jnp.float32).reshape(1, n_y)
                kernel = _linear_y_bias_kernel
                in_specs = [x_spec, w_spec,
                            _resident_spec((1, n_y), lambda i: (0, 0), single_buffer)]
                args = (x2, weight, b2)

        return pl.pallas_call(
            kernel,
            out_shape=out_shape,
            grid=grid,
            in_specs=in_specs,
            out_specs=y_spec,
            compiler_params=cparams,
            cost_estimate=cost,
        )(*args)

    try:
        y = _run(single_buffer=True)
    except Exception:
        # pipeline_mode / pl.Buffered(1) unsupported on this JAX build:
        # fall back to default (double-buffered) resident operands.
        y = _run(single_buffer=False)

    if transposed_out:
        y = y.T                                   # tiny (n_y, B) -> (B, n_y)
    return y.reshape(*orig_shape[:-1], n_y)


def _reference_forward(x, weight, bias=None):
    y = x @ weight.T
    if bias is not None:
        y = y + bias
    return y


if __name__ == "__main__":
    key = jax.random.PRNGKey(0)
    k_x, k_w, k_b, k_x3, k_w2, k_xw = jax.random.split(key, 6)

    # Production-like LinearOutput shapes: n_x=32 states -> n_y=8 outputs.
    n_x, n_y, B = 32, 8, 256
    x = jax.random.normal(k_x, (B, n_x), jnp.float32)
    weight = (1.0 / jnp.sqrt(n_x)) * jax.random.normal(k_w, (n_y, n_x), jnp.float32)

    # Multi-step lane-dense (transposed-output) path: tb=128 -> grid=(2,).
    y = jax.block_until_ready(linear_output_forward(x, weight, block_b=128))
    assert y.shape == (B, n_y)
    assert jnp.allclose(y, _reference_forward(x, weight), atol=1e-5, rtol=1e-5)

    # Arbitrary leading dims + optional bias (nn.Linear broadcasts over them).
    bias = 0.1 * jax.random.normal(k_b, (n_y,), jnp.float32)
    x3 = jax.random.normal(k_x3, (2, 4, n_x), jnp.float32)
    y3 = jax.block_until_ready(linear_output_forward(x3, weight, bias))
    assert y3.shape == (2, 4, n_y)
    assert jnp.allclose(y3, _reference_forward(x3, weight, bias),
                        atol=1e-5, rtol=1e-5)

    # Wide-output path (n_y >= 128): standard layout, tb multiple of 8, grid=(4,).
    n_y2 = 128
    w2 = (1.0 / jnp.sqrt(n_x)) * jax.random.normal(k_w2, (n_y2, n_x), jnp.float32)
    xw = jax.random.normal(k_xw, (64, n_x), jnp.float32)
    yw = jax.block_until_ready(linear_output_forward(xw, w2, block_b=16))
    assert yw.shape == (64, n_y2)
    assert jnp.allclose(yw, _reference_forward(xw, w2), atol=1e-4, rtol=1e-4)

    print("KERNEL_OK")
</pallas_src>

<mosaic_0001>
module attributes {stable_mosaic.version = 11 : i64} {
  func.func @_linear_yt_kernel(%arg0: i32, %arg1: memref<128x32xf32, #tpu.memory_space<vmem>>, %arg2: memref<8x32xf32, #tpu.memory_space<vmem>>, %arg3: memref<8x128xf32, #tpu.memory_space<vmem>>) attributes {dimension_semantics = [#tpu.dimension_semantics<parallel>], iteration_bounds = array<i64: 2>, scalar_prefetch = 0 : i64, scratch_operands = 0 : i64, tpu.core_type = #tpu.core_type<tc>, window_params = [{transform_indices = @transform_0, window_bounds = array<i64: 128, 32>}, {pipeline_mode = #tpu.pipeline_mode<synchronous>, transform_indices = @transform_1, window_bounds = array<i64: 8, 32>}, {transform_indices = @transform_2, window_bounds = array<i64: 8, 128>}]} {
    %c0 = arith.constant 0 : index
    %c0_0 = arith.constant 0 : index
    %0 = vector.load %arg2[%c0, %c0_0] : memref<8x32xf32, #tpu.memory_space<vmem>>, vector<8x32xf32>
    %c0_1 = arith.constant 0 : index
    %c0_2 = arith.constant 0 : index
    %1 = vector.load %arg1[%c0_1, %c0_2] : memref<128x32xf32, #tpu.memory_space<vmem>>, vector<128x32xf32>
    %cst = arith.constant dense<0.000000e+00> : vector<8x128xf32>
    %2 = tpu.matmul %0, %1, %cst {dimension_numbers = #tpu.dot_dimension_numbers<[1], [1], [0], [0], [0, 0, 1, 0], [], []>} : vector<8x32xf32>, vector<128x32xf32>, vector<8x128xf32> -> vector<8x128xf32>
    %c0_3 = arith.constant 0 : index
    %c0_4 = arith.constant 0 : index
    %3 = vector.load %arg3[%c0_3, %c0_4] : memref<8x128xf32, #tpu.memory_space<vmem>>, vector<8x128xf32>
    tpu.vector_store %arg3[%c0_3, %c0_4], %2 {strides = array<i32>} : memref<8x128xf32, #tpu.memory_space<vmem>>, vector<8x128xf32>,
    return
  }
  func.func @transform_0(%arg0: i32) -> (i32, i32) {
    %c0_i32 = arith.constant 0 : i32
    %c0_i32_0 = arith.constant 0 : i32
    return %arg0, %c0_i32 : i32, i32
  }
  func.func @transform_1(%arg0: i32) -> (i32, i32) {
    %c0_i32 = arith.constant 0 : i32
    %c0_i32_0 = arith.constant 0 : i32
    %c0_i32_1 = arith.constant 0 : i32
    return %c0_i32, %c0_i32_0 : i32, i32
  }
  func.func @transform_2(%arg0: i32) -> (i32, i32) {
    %c0_i32 = arith.constant 0 : i32
    %c0_i32_0 = arith.constant 0 : i32
    return %c0_i32, %arg0 : i32, i32
  }
}

module attributes {stable_mosaic.version = 11 : i64} {
  func.func @_linear_yt_kernel(%arg0: i32, %arg1: memref<128x32xf32, #tpu.memory_space<vmem>>, %arg2: memref<8x32xf32, #tpu.memory_space<vmem>>, %arg3: memref<8x128xf32, #tpu.memory_space<vmem>>) attributes {dimension_semantics = [#tpu.dimension_semantics<parallel>], iteration_bounds = array<i64: 2>, scalar_prefetch = 0 : i64, scratch_operands = 0 : i64, tpu.core_type = #tpu.core_type<tc>, window_params = [{transform_indices = @transform_0, window_bounds = array<i64: 128, 32>}, {pipeline_mode = #tpu.pipeline_mode<synchronous>, transform_indices = @transform_1, window_bounds = array<i64: 8, 32>}, {transform_indices = @transform_2, window_bounds = array<i64: 8, 128>}]} {
    %c0 = arith.constant 0 : index
    %c0_0 = arith.constant 0 : index
    %0 = vector.load %arg2[%c0, %c0_0] : memref<8x32xf32, #tpu.memory_space<vmem>>, vector<8x32xf32>
    %c0_1 = arith.constant 0 : index
    %c0_2 = arith.constant 0 : index
    %1 = vector.load %arg1[%c0_1, %c0_2] : memref<128x32xf32, #tpu.memory_space<vmem>>, vector<128x32xf32>
    %cst = arith.constant dense<0.000000e+00> : vector<8x128xf32>
    %2 = tpu.matmul %0, %1, %cst {dimension_numbers = #tpu.dot_dimension_numbers<[1], [1], [0], [0], [0, 0, 1, 0], [], []>} : vector<8x32xf32>, vector<128x32xf32>, vector<8x128xf32> -> vector<8x128xf32>
    %c0_3 = arith.constant 0 : index
    %c0_4 = arith.constant 0 : index
    %3 = vector.load %arg3[%c0_3, %c0_4] : memref<8x128xf32, #tpu.memory_space<vmem>>, vector<8x128xf32>
    tpu.vector_store %arg3[%c0_3, %c0_4], %2 {strides = array<i32>} : memref<8x128xf32, #tpu.memory_space<vmem>>, vector<8x128xf32>,
    return
  }
  func.func @transform_0(%arg0: i32) -> (i32, i32) {
    %c0_i32 = arith.constant 0 : i32
    %c0_i32_0 = arith.constant 0 : i32
    return %arg0, %c0_i32 : i32, i32
  }
  func.func @transform_1(%arg0: i32) -> (i32, i32) {
    %c0_i32 = arith.constant 0 : i32
    %c0_i32_0 = arith.constant 0 : i32
    %c0_i32_1 = arith.constant 0 : i32
    return %c0_i32, %c0_i32_0 : i32, i32
  }
  func.func @transform_2(%arg0: i32) -> (i32, i32) {
    %c0_i32 = arith.constant 0 : i32
    %c0_i32_0 = arith.constant 0 : i32
    return %c0_i32, %arg0 : i32, i32
  }
}

</mosaic_0001>

<llo_original>
// kernel: tpu_custom_call.1
$region0: #{tpu_custom_call.1}
  #allocation0 [shape = 'u32[]', space=smem, size = 0x4, offset = 0x4, fixed_abs, tag = 'smem constant byte address 0x4 - core index']
  #allocation1 [shape = 'u32[144,128]{1,0:T(1,128)}', space=vmem, size = 0x12000, scoped, tag = 'internal scratch']
  %s0 = inlined_call_operand.vmem [shape: f32[256,32], index: 0, kind: input, shape index: {}]
  %s1 = inlined_call_operand.vmem [shape: f32[8,32], index: 1, kind: input, shape index: {}]
  %s2 = inlined_call_operand.hbm [shape: f32[8,256], index: 2, kind: output, shape index: {}]
  %s3 = sld [smem:[#allocation0]]
  $region41: #{tpu_custom_call.1} parent=0
    _
  %s5 = ssub.s32 1, %s3
  %s6 = scalar_select 0, %s5, %s3
  $region1: #{tpu_custom_call.1} parent=0
    #allocation2 [shape = 'u8[8192]{0}', space=vmem, size = 0x2000, scoped, tag = 'output window, operand 0']
    #allocation3 [shape = 's32[2]{0}', space=sflag, size = 0x8, scoped, tag = 'scoped memory for tpu_custom_call.1']
    %7 = vsyncpa [#allocation3], 0
    %s8 = scalar_lea.sflag [#allocation3], 1
    %9 = vsyncpa %s8, 0
    loop: start=0, step=1, limit=4
    $region2: #{tpu_custom_call.1} parent=1 // loop_pre_header
      _
    $region3: #{tpu_custom_call.1} parent=1 // loop_header
      %s11 = sphi 0, %s15
      %p12 = scmp.ge.s32.totalorder %s11, 4
      %s21 = sphi 0, %s23
      %s24 = sphi 0, %s21
      %s25 = sphi 0, %s24
      %s41 = sphi 0, %s25
      %s45 = sphi 0, %s45
      %s47 = sphi 0, %s45
      %s48 = sphi 0, %s47
      %s62 = sphi 0, %s48
      %s68 = sphi 0, %s70
      %s71 = sphi 0, %s68
      %s72 = sphi 0, %s71
      %s88 = sphi 0, %s72
    $region4: #{tpu_custom_call.1} parent=1 // loop_header_branch
      %14 = sbr.rel (%p12) target = $region8
    $region5: #{tpu_custom_call.1} parent=1 // loop_body
      %s16 = ssub.s32 %s11, 1
      %s17 = ssub.s32 %s11, 2
      %s18 = sadd.s32 %s11, 1
      %s19 = ssub.s32 %s11, %s18
      %p20 = scmp.eq.s32.totalorder %s19, 0
      %s22 = sadd.s32 %s21, 1
      %s23 = scalar_select %p20, %s21, %s22
      %p26 = pneg %p20
      %p27 = scmp.eq.s32.totalorder %s11, 1
      %p28 = por %p26, %p27
      %p29 = scmp.ne.s32.totalorder %s21, %s24
      %p30 = scmp.eq.s32.totalorder %s11, 0
      %p31 = por %p29, %p30
      %p32 = scmp.ne.s32.totalorder %s21, %s24
      %p33 = scmp.eq.s32.totalorder %s16, 1
      %p34 = por %p32, %p33
      %p35 = scmp.ne.s32.totalorder %s24, %s25
      %p36 = scmp.eq.s32.totalorder %s16, 0
      %p37 = por %p35, %p36
      %p38 = scmp.ne.s32.totalorder %s24, %s25
      %p39 = scmp.eq.s32.totalorder %s17, 1
      %p40 = por %p38, %p39
      %p42 = scmp.ne.s32.totalorder %s25, %s41
      %p43 = scmp.eq.s32.totalorder %s17, 0
      %p44 = por %p42, %p43
      %s46 = sadd.s32 %s45, 1
      %p49 = scmp.eq.s32.totalorder %s11, 1
      %p50 = scmp.ne.s32.totalorder %s45, %s47
      %p51 = scmp.eq.s32.totalorder %s11, 0
      %p52 = por %p50, %p51
      %p53 = scmp.ne.s32.totalorder %s45, %s47
      %p54 = scmp.eq.s32.totalorder %s16, 1
      %p55 = por %p53, %p54
      %p56 = scmp.ne.s32.totalorder %s47, %s48
      %p57 = scmp.eq.s32.totalorder %s16, 0
      %p58 = por %p56, %p57
      %p59 = scmp.ne.s32.totalorder %s47, %s48
      %p60 = scmp.eq.s32.totalorder %s17, 1
      %p61 = por %p59, %p60
      %p63 = scmp.ne.s32.totalorder %s48, %s62
      %p64 = scmp.eq.s32.totalorder %s17, 0
      %p65 = por %p63, %p64
      %s66 = ssub.s32 %s11, %s18
      %p67 = scmp.eq.s32.totalorder %s66, 0
      %s69 = sadd.s32 %s68, 1
      %s70 = scalar_select %p67, %s68, %s69
      %p73 = pneg %p67
      %p74 = scmp.eq.s32.totalorder %s11, 1
      %p75 = por %p73, %p74
      %p76 = scmp.ne.s32.totalorder %s68, %s71
      %p77 = scmp.eq.s32.totalorder %s11, 0
      %p78 = por %p76, %p77
      %p79 = scmp.ne.s32.totalorder %s68, %s71
      %p80 = scmp.eq.s32.totalorder %s16, 1
      %p81 = por %p79, %p80
      %p82 = scmp.ne.s32.totalorder %s71, %s72
      %p83 = scmp.eq.s32.totalorder %s16, 0
      %p84 = por %p82, %p83
      %p85 = scmp.ne.s32.totalorder %s71, %s72
      %p86 = scmp.eq.s32.totalorder %s17, 1
      %p87 = por %p85, %p86
      %p89 = scmp.ne.s32.totalorder %s72, %s88
      %p90 = scmp.eq.s32.totalorder %s17, 0
      %p91 = por %p89, %p90
      %p92 = scmp.le.s32.totalorder 1, %s11
      %p93 = scmp.lt.s32.totalorder %s11, 3
      %p94 = pnand %p92, %p93
      %p95 = pneg %p94
      // Predicated region
      $region9: #{tpu_custom_call.1} parent=5 // pred_check
        _
      $region10: #{tpu_custom_call.1} parent=5 // pred_check_branch
        %97 = sbr.rel (%p94) target = $region12
      $region11: #{tpu_custom_call.1} parent=5 // pred_region
        %s98 = ssub.s32 %s11, 1
        // Predicated region
        $region13: #{tpu_custom_call.1} parent=11 // pred_check
          %p99 = pneg %p58
        $region14: #{tpu_custom_call.1} parent=11 // pred_check_branch
          %101 = sbr.rel (%p99) target = $region16
        $region15: #{tpu_custom_call.1} parent=11 // pred_region
          _
        $region16: #{tpu_custom_call.1} parent=11 // pred_fallthru
          _
      $region12: #{tpu_custom_call.1} parent=5 // pred_fallthru
        _
      %p102 = scmp.lt.s32.totalorder %s11, 2
      // Predicated region
      $region17: #{tpu_custom_call.1} parent=5 // pred_check
        %p103 = pneg %p102
      $region18: #{tpu_custom_call.1} parent=5 // pred_check_branch
        %105 = sbr.rel (%p103) target = $region20
      $region19: #{tpu_custom_call.1} parent=5 // pred_region
        // Predicated region
        $region21: #{tpu_custom_call.1} parent=19 // pred_check
          %p106 = pneg %p31
        $region22: #{tpu_custom_call.1} parent=19 // pred_check_branch
          %108 = sbr.rel (%p106) target = $region24
        $region23: #{tpu_custom_call.1} parent=19 // pred_region
          %s109 = smul.u32 16, %s11
          %p110 = scmp.lt.s32.totalorder %s109, 31
          %s111 = scalar_select %p110, %s109, 31
          %s112 = smul.addr %s111, 8
          %s113 = scalar_lea.vmem %s0, %s112
          %s114 = smul.u32 16, %s11
        $region24: #{tpu_custom_call.1} parent=19 // pred_fallthru
          _
      $region20: #{tpu_custom_call.1} parent=5 // pred_fallthru
        _
      %p115 = scmp.le.s32.totalorder 1, %s11
      %p116 = scmp.lt.s32.totalorder %s11, 3
      %p117 = pnand %p115, %p116
      %p118 = pneg %p117
      // Predicated region
      $region25: #{tpu_custom_call.1} parent=5 // pred_check
        _
      $region26: #{tpu_custom_call.1} parent=5 // pred_check_branch
        %120 = sbr.rel (%p117) target = $region28
      $region27: #{tpu_custom_call.1} parent=5 // pred_region
        %s121 = ssub.s32 %s11, 1
        %s122 = smul.u32 16, %s16
        %p123 = scmp.lt.s32.totalorder %s122, 31
        %s124 = scalar_select %p123, %s122, 31
        %s125 = smul.addr %s124, 8
        %s126 = scalar_lea.vmem %s0, %s125
        %p127 = pneg %p37
        %p128 = pneg %p34
        %p129 = pneg %p58
        %p130 = pneg %p55
        %p131 = pneg %p84
        %p132 = pneg %p81
        %s133 = sand.u32 %s71, 1
        %s134 = scalar_lea.sflag [#allocation3], %s133
        %s135 = sand.u32 %s71, 1
        %s136 = smul.addr %s135, 8
        %s137 = scalar_lea.vmem [#allocation2], %s136
        %s138 = smul.u32 16, %s16
        %p139 = scmp.lt.s32.totalorder %s138, 31
        %s140 = scalar_select %p139, %s138, 31
        %s141 = smul.addr %s140, 8
        %s142 = scalar_lea.vmem %s0, %s141
        %s143 = smul.u32 16, %s16
        %v144 = vld [vmem:[%s1] sm:$0xff]
        %v145 = vld [vmem:[%s142] sm:$0xff]
        %v146 = vld [vmem:[%s142 + $0x8] sm:$0xff]
        %v147 = vld [vmem:[%s142 + $0x10] sm:$0xff]
        %v148 = vld [vmem:[%s142 + $0x18] sm:$0xff]
        %v149 = vld [vmem:[%s142 + $0x20] sm:$0xff]
        %v150 = vld [vmem:[%s142 + $0x28] sm:$0xff]
        %v151 = vld [vmem:[%s142 + $0x30] sm:$0xff]
        %v152 = vld [vmem:[%s142 + $0x38] sm:$0xff]
        %v153 = vld [vmem:[%s142 + $0x40] sm:$0xff]
        %v154 = vld [vmem:[%s142 + $0x48] sm:$0xff]
        %v155 = vld [vmem:[%s142 + $0x50] sm:$0xff]
        %v156 = vld [vmem:[%s142 + $0x58] sm:$0xff]
        %v157 = vld [vmem:[%s142 + $0x60] sm:$0xff]
        %v158 = vld [vmem:[%s142 + $0x68] sm:$0xff]
        %v159 = vld [vmem:[%s142 + $0x70] sm:$0xff]
        %v160 = vld [vmem:[%s142 + $0x78] sm:$0xff]
        %vm161 = vcmask 261120
        %v163 = vsel %vm161, %v144, 0
        %v166 = vsel %vm161, %v145, 0
        %v169 = vsel %vm161, %v146, 0
        %v172 = vsel %vm161, %v147, 0
        %v175 = vsel %vm161, %v148, 0
        %v178 = vsel %vm161, %v149, 0
        %v181 = vsel %vm161, %v150, 0
        %v184 = vsel %vm161, %v151, 0
        %v187 = vsel %vm161, %v152, 0
        %v190 = vsel %vm161, %v153, 0
        %v193 = vsel %vm161, %v154, 0
        %v196 = vsel %vm161, %v155, 0
        %v199 = vsel %vm161, %v156, 0
        %v202 = vsel %vm161, %v157, 0
        %v205 = vsel %vm161, %v158, 0
        %v208 = vsel %vm161, %v159, 0
        %v211 = vsel %vm161, %v160, 0
        %213 = vmatprep.subr.mxu0 0.0
        %214 = vmatpush1.xpose.msra.mxu0 %v211
        %215 = vmatprep.subr.mxu0 0.0
        %216 = vmatpush1.xpose.msra.mxu0 %v208
        %217 = vmatprep.subr.mxu0 0.0
        %218 = vmatpush1.xpose.msra.mxu0 %v205
        %219 = vmatprep.subr.mxu0 0.0
        %220 = vmatpush1.xpose.msra.mxu0 %v202
        %221 = vmatprep.subr.mxu0 0.0
        %222 = vmatpush1.xpose.msra.mxu0 %v199
        %223 = vmatprep.subr.mxu0 0.0
        %224 = vmatpush1.xpose.msra.mxu0 %v196
        %225 = vmatprep.subr.mxu0 0.0
        %226 = vmatpush1.xpose.msra.mxu0 %v193
        %227 = vmatprep.subr.mxu0 0.0
        %228 = vmatpush1.xpose.msra.mxu0 %v190
        %229 = vmatprep.subr.mxu0 0.0
        %230 = vmatpush1.xpose.msra.mxu0 %v187
        %231 = vmatprep.subr.mxu0 0.0
        %232 = vmatpush1.xpose.msra.mxu0 %v184
        %233 = vmatprep.subr.mxu0 0.0
        %234 = vmatpush1.xpose.msra.mxu0 %v181
        %235 = vmatprep.subr.mxu0 0.0
        %236 = vmatpush1.xpose.msra.mxu0 %v178
        %237 = vmatprep.subr.mxu0 0.0
        %238 = vmatpush1.xpose.msra.mxu0 %v175
        %239 = vmatprep.subr.mxu0 0.0
        %240 = vmatpush1.xpose.msra.mxu0 %v172
        %241 = vmatprep.subr.mxu0 0.0
        %242 = vmatpush1.xpose.msra.mxu0 %v169
        %243 = vmatprep.subr.mxu0 0.0
        %244 = vmatpush1.xpose.msra.mxu0 %v166
        %245 = vmatprep.subr.mxu0 0.0
        %246 = vmatpush2.xpose.msra.mxu0 0.0
        %247 = vmatprep.subr.mxu0 0.0
        %248 = vmatpush2.xpose.msra.mxu0 0.0
        %249 = vmatprep.subr.mxu0 0.0
        %250 = vmatpush2.xpose.msra.mxu0 0.0
        %251 = vmatprep.subr.mxu0 0.0
        %252 = vmatpush2.xpose.msra.mxu0 0.0
        %253 = vmatprep.subr.mxu0 0.0
        %254 = vmatpush2.xpose.msra.mxu0 0.0
        %255 = vmatprep.subr.mxu0 0.0
        %256 = vmatpush2.xpose.msra.mxu0 0.0
        %257 = vmatprep.subr.mxu0 0.0
        %258 = vmatpush2.xpose.msra.mxu0 0.0
        %259 = vmatprep.subr.mxu0 0.0
        %260 = vmatpush2.xpose.msra.mxu0 0.0
        %261 = vmatprep.subr.mxu0 0.0
        %262 = vmatpush2.xpose.msra.mxu0 0.0
        %263 = vmatprep.subr.mxu0 0.0
        %264 = vmatpush2.xpose.msra.mxu0 0.0
        %265 = vmatprep.subr.mxu0 0.0
        %266 = vmatpush2.xpose.msra.mxu0 0.0
        %267 = vmatprep.subr.mxu0 0.0
        %268 = vmatpush2.xpose.msra.mxu0 0.0
        %269 = vmatprep.subr.mxu0 0.0
        %270 = vmatpush2.xpose.msra.mxu0 0.0
        %271 = vmatprep.subr.mxu0 0.0
        %272 = vmatpush2.xpose.msra.mxu0 0.0
        %273 = vmatprep.subr.mxu0 0.0
        %274 = vmatpush2.xpose.msra.mxu0 0.0
        %275 = vmatprep.subr.mxu0 0.0
        %276 = vmatpush2.xpose.msra.mxu0 0.0
        %277 = vmatprep.mubr.f32.mxu0 0.0
        %278 = vmatmul.mubr.f32.gmra.mxu0 %v163
        %v279 = vpop.f32.mrf.mxu0
        %v280 = vadd.f32 0.0, %v279
        %v281 = vpop.f32.mrf.mxu0
        %282 = vdwg.mxu0
        %283 = vst [vmem:[%s137] sm:$0xff] %v280
        %s284 = sand.u32 %s71, 1
        %s285 = scalar_lea.sflag [#allocation3], %s284
        %s286 = sand.u32 %s71, 1
        %s287 = smul.addr %s286, 8
        %s288 = scalar_lea.vmem [#allocation2], %s287
        // Predicated region
        $region29: #{tpu_custom_call.1} parent=27 // pred_check
          %p289 = pneg %p81
        $region30: #{tpu_custom_call.1} parent=27 // pred_check_branch
          %291 = sbr.rel (%p289) target = $region32
        $region31: #{tpu_custom_call.1} parent=27 // pred_region
          %s293 = ssub.s32 128, 128
          %294 = vsyncadd %s285, %s293
          %s295 = smul.addr %s16, 128
          %s296 = scalar_lea.hbm %s2, %s295
          %s298 = sshll.u32 %s288, 4
          %s299 = int_to_ptr.vmem [resolvable:$true] %s298
          %301 = dma.vmem_to_hbm [thread:$0]  %s299, 128, %s296, %s285
        $region32: #{tpu_custom_call.1} parent=27 // pred_fallthru
          _
      $region28: #{tpu_custom_call.1} parent=5 // pred_fallthru
        _
      %p302 = scmp.le.s32.totalorder 2, %s11
      // Predicated region
      $region33: #{tpu_custom_call.1} parent=5 // pred_check
        %p303 = pneg %p302
      $region34: #{tpu_custom_call.1} parent=5 // pred_check_branch
        %305 = sbr.rel (%p303) target = $region36
      $region35: #{tpu_custom_call.1} parent=5 // pred_region
        %s306 = ssub.s32 %s11, 2
        // Predicated region
        $region37: #{tpu_custom_call.1} parent=35 // pred_check
          %p307 = pneg %p87
        $region38: #{tpu_custom_call.1} parent=35 // pred_check_branch
          %309 = sbr.rel (%p307) target = $region40
        $region39: #{tpu_custom_call.1} parent=35 // pred_region
          %s310 = sand.u32 %s72, 1
          %s311 = scalar_lea.sflag [#allocation3], %s310
          %s312 = sand.u32 %s72, 1
          %s313 = smul.addr %s312, 8
          %s314 = scalar_lea.vmem [#allocation2], %s313
          %315 = dma.done %s311, 128
        $region40: #{tpu_custom_call.1} parent=35 // pred_fallthru
          _
      $region36: #{tpu_custom_call.1} parent=5 // pred_fallthru
        _
    $region6: #{tpu_custom_call.1} parent=1 // loop_footer
      %s15 = sadd.s32 1, %s11
    $region7: #{tpu_custom_call.1} parent=1 // loop_footer_branch
      %10 = sbr.rel target = $region3
    $region8: #{tpu_custom_call.1} parent=1 // loop_exit
      _
    %316 = vsyncpa [#allocation3], 1
    %s317 = scalar_lea.sflag [#allocation3], 1
    %318 = vsyncpa %s317, 1

// kernel: tpu_custom_call.1
$region0: #{tpu_custom_call.1}
  #allocation0 [shape = 'u32[]', space=smem, size = 0x4, offset = 0x4, fixed_abs, tag = 'smem constant byte address 0x4 - core index']
  #allocation1 [shape = 'u32[144,128]{1,0:T(1,128)}', space=vmem, size = 0x12000, scoped, tag = 'internal scratch']
  %s0 = inlined_call_operand.vmem [shape: f32[256,32], index: 0, kind: input, shape index: {}]
  %s1 = inlined_call_operand.vmem [shape: f32[8,32], index: 1, kind: input, shape index: {}]
  %s2 = inlined_call_operand.hbm [shape: f32[8,256], index: 2, kind: output, shape index: {}]
  %s3 = sld [smem:[#allocation0]]
  $region41: #{tpu_custom_call.1} parent=0
    _
  %s5 = ssub.s32 1, %s3
  %s6 = scalar_select 0, %s5, %s3
  $region1: #{tpu_custom_call.1} parent=0
    #allocation2 [shape = 'u8[8192]{0}', space=vmem, size = 0x2000, scoped, tag = 'output window, operand 0']
    #allocation3 [shape = 's32[2]{0}', space=sflag, size = 0x8, scoped, tag = 'scoped memory for tpu_custom_call.1']
    %7 = vsyncpa [#allocation3], 0
    %s8 = scalar_lea.sflag [#allocation3], 1
    %9 = vsyncpa %s8, 0
    loop: start=0, step=1, limit=4
    $region2: #{tpu_custom_call.1} parent=1 // loop_pre_header
      _
    $region3: #{tpu_custom_call.1} parent=1 // loop_header
      %s11 = sphi 0, %s15
      %p12 = scmp.ge.s32.totalorder %s11, 4
      %s21 = sphi 0, %s23
      %s24 = sphi 0, %s21
      %s25 = sphi 0, %s24
      %s41 = sphi 0, %s25
      %s45 = sphi 0, %s45
      %s47 = sphi 0, %s45
      %s48 = sphi 0, %s47
      %s62 = sphi 0, %s48
      %s68 = sphi 0, %s70
      %s71 = sphi 0, %s68
      %s72 = sphi 0, %s71
      %s88 = sphi 0, %s72
    $region4: #{tpu_custom_call.1} parent=1 // loop_header_branch
      %14 = sbr.rel (%p12) target = $region8
    $region5: #{tpu_custom_call.1} parent=1 // loop_body
      %s16 = ssub.s32 %s11, 1
      %s17 = ssub.s32 %s11, 2
      %s18 = sadd.s32 %s11, 1
      %s19 = ssub.s32 %s11, %s18
      %p20 = scmp.eq.s32.totalorder %s19, 0
      %s22 = sadd.s32 %s21, 1
      %s23 = scalar_select %p20, %s21, %s22
      %p26 = pneg %p20
      %p27 = scmp.eq.s32.totalorder %s11, 1
      %p28 = por %p26, %p27
      %p29 = scmp.ne.s32.totalorder %s21, %s24
      %p30 = scmp.eq.s32.totalorder %s11, 0
      %p31 = por %p29, %p30
      %p32 = scmp.ne.s32.totalorder %s21, %s24
      %p33 = scmp.eq.s32.totalorder %s16, 1
      %p34 = por %p32, %p33
      %p35 = scmp.ne.s32.totalorder %s24, %s25
      %p36 = scmp.eq.s32.totalorder %s16, 0
      %p37 = por %p35, %p36
      %p38 = scmp.ne.s32.totalorder %s24, %s25
      %p39 = scmp.eq.s32.totalorder %s17, 1
      %p40 = por %p38, %p39
      %p42 = scmp.ne.s32.totalorder %s25, %s41
      %p43 = scmp.eq.s32.totalorder %s17, 0
      %p44 = por %p42, %p43
      %s46 = sadd.s32 %s45, 1
      %p49 = scmp.eq.s32.totalorder %s11, 1
      %p50 = scmp.ne.s32.totalorder %s45, %s47
      %p51 = scmp.eq.s32.totalorder %s11, 0
      %p52 = por %p50, %p51
      %p53 = scmp.ne.s32.totalorder %s45, %s47
      %p54 = scmp.eq.s32.totalorder %s16, 1
      %p55 = por %p53, %p54
      %p56 = scmp.ne.s32.totalorder %s47, %s48
      %p57 = scmp.eq.s32.totalorder %s16, 0
      %p58 = por %p56, %p57
      %p59 = scmp.ne.s32.totalorder %s47, %s48
      %p60 = scmp.eq.s32.totalorder %s17, 1
      %p61 = por %p59, %p60
      %p63 = scmp.ne.s32.totalorder %s48, %s62
      %p64 = scmp.eq.s32.totalorder %s17, 0
      %p65 = por %p63, %p64
      %s66 = ssub.s32 %s11, %s18
      %p67 = scmp.eq.s32.totalorder %s66, 0
      %s69 = sadd.s32 %s68, 1
      %s70 = scalar_select %p67, %s68, %s69
      %p73 = pneg %p67
      %p74 = scmp.eq.s32.totalorder %s11, 1
      %p75 = por %p73, %p74
      %p76 = scmp.ne.s32.totalorder %s68, %s71
      %p77 = scmp.eq.s32.totalorder %s11, 0
      %p78 = por %p76, %p77
      %p79 = scmp.ne.s32.totalorder %s68, %s71
      %p80 = scmp.eq.s32.totalorder %s16, 1
      %p81 = por %p79, %p80
      %p82 = scmp.ne.s32.totalorder %s71, %s72
      %p83 = scmp.eq.s32.totalorder %s16, 0
      %p84 = por %p82, %p83
      %p85 = scmp.ne.s32.totalorder %s71, %s72
      %p86 = scmp.eq.s32.totalorder %s17, 1
      %p87 = por %p85, %p86
      %p89 = scmp.ne.s32.totalorder %s72, %s88
      %p90 = scmp.eq.s32.totalorder %s17, 0
      %p91 = por %p89, %p90
      %p92 = scmp.le.s32.totalorder 1, %s11
      %p93 = scmp.lt.s32.totalorder %s11, 3
      %p94 = pnand %p92, %p93
      %p95 = pneg %p94
      // Predicated region
      $region9: #{tpu_custom_call.1} parent=5 // pred_check
        _
      $region10: #{tpu_custom_call.1} parent=5 // pred_check_branch
        %97 = sbr.rel (%p94) target = $region12
      $region11: #{tpu_custom_call.1} parent=5 // pred_region
        %s98 = ssub.s32 %s11, 1
        // Predicated region
        $region13: #{tpu_custom_call.1} parent=11 // pred_check
          %p99 = pneg %p58
        $region14: #{tpu_custom_call.1} parent=11 // pred_check_branch
          %101 = sbr.rel (%p99) target = $region16
        $region15: #{tpu_custom_call.1} parent=11 // pred_region
          _
        $region16: #{tpu_custom_call.1} parent=11 // pred_fallthru
          _
      $region12: #{tpu_custom_call.1} parent=5 // pred_fallthru
        _
      %p102 = scmp.lt.s32.totalorder %s11, 2
      // Predicated region
      $region17: #{tpu_custom_call.1} parent=5 // pred_check
        %p103 = pneg %p102
      $region18: #{tpu_custom_call.1} parent=5 // pred_check_branch
        %105 = sbr.rel (%p103) target = $region20
      $region19: #{tpu_custom_call.1} parent=5 // pred_region
        // Predicated region
        $region21: #{tpu_custom_call.1} parent=19 // pred_check
          %p106 = pneg %p31
        $region22: #{tpu_custom_call.1} parent=19 // pred_check_branch
          %108 = sbr.rel (%p106) target = $region24
        $region23: #{tpu_custom_call.1} parent=19 // pred_region
          %s109 = smul.u32 16, %s11
          %p110 = scmp.lt.s32.totalorder %s109, 31
          %s111 = scalar_select %p110, %s109, 31
          %s112 = smul.addr %s111, 8
          %s113 = scalar_lea.vmem %s0, %s112
          %s114 = smul.u32 16, %s11
        $region24: #{tpu_custom_call.1} parent=19 // pred_fallthru
          _
      $region20: #{tpu_custom_call.1} parent=5 // pred_fallthru
        _
      %p115 = scmp.le.s32.totalorder 1, %s11
      %p116 = scmp.lt.s32.totalorder %s11, 3
      %p117 = pnand %p115, %p116
      %p118 = pneg %p117
      // Predicated region
      $region25: #{tpu_custom_call.1} parent=5 // pred_check
        _
      $region26: #{tpu_custom_call.1} parent=5 // pred_check_branch
        %120 = sbr.rel (%p117) target = $region28
      $region27: #{tpu_custom_call.1} parent=5 // pred_region
        %s121 = ssub.s32 %s11, 1
        %s122 = smul.u32 16, %s16
        %p123 = scmp.lt.s32.totalorder %s122, 31
        %s124 = scalar_select %p123, %s122, 31
        %s125 = smul.addr %s124, 8
        %s126 = scalar_lea.vmem %s0, %s125
        %p127 = pneg %p37
        %p128 = pneg %p34
        %p129 = pneg %p58
        %p130 = pneg %p55
        %p131 = pneg %p84
        %p132 = pneg %p81
        %s133 = sand.u32 %s71, 1
        %s134 = scalar_lea.sflag [#allocation3], %s133
        %s135 = sand.u32 %s71, 1
        %s136 = smul.addr %s135, 8
        %s137 = scalar_lea.vmem [#allocation2], %s136
        %s138 = smul.u32 16, %s16
        %p139 = scmp.lt.s32.totalorder %s138, 31
        %s140 = scalar_select %p139, %s138, 31
        %s141 = smul.addr %s140, 8
        %s142 = scalar_lea.vmem %s0, %s141
        %s143 = smul.u32 16, %s16
        %v144 = vld [vmem:[%s1] sm:$0xff]
        %v145 = vld [vmem:[%s142] sm:$0xff]
        %v146 = vld [vmem:[%s142 + $0x8] sm:$0xff]
        %v147 = vld [vmem:[%s142 + $0x10] sm:$0xff]
        %v148 = vld [vmem:[%s142 + $0x18] sm:$0xff]
        %v149 = vld [vmem:[%s142 + $0x20] sm:$0xff]
        %v150 = vld [vmem:[%s142 + $0x28] sm:$0xff]
        %v151 = vld [vmem:[%s142 + $0x30] sm:$0xff]
        %v152 = vld [vmem:[%s142 + $0x38] sm:$0xff]
        %v153 = vld [vmem:[%s142 + $0x40] sm:$0xff]
        %v154 = vld [vmem:[%s142 + $0x48] sm:$0xff]
        %v155 = vld [vmem:[%s142 + $0x50] sm:$0xff]
        %v156 = vld [vmem:[%s142 + $0x58] sm:$0xff]
        %v157 = vld [vmem:[%s142 + $0x60] sm:$0xff]
        %v158 = vld [vmem:[%s142 + $0x68] sm:$0xff]
        %v159 = vld [vmem:[%s142 + $0x70] sm:$0xff]
        %v160 = vld [vmem:[%s142 + $0x78] sm:$0xff]
        %vm161 = vcmask 261120
        %v163 = vsel %vm161, %v144, 0
        %v166 = vsel %vm161, %v145, 0
        %v169 = vsel %vm161, %v146, 0
        %v172 = vsel %vm161, %v147, 0
        %v175 = vsel %vm161, %v148, 0
        %v178 = vsel %vm161, %v149, 0
        %v181 = vsel %vm161, %v150, 0
        %v184 = vsel %vm161, %v151, 0
        %v187 = vsel %vm161, %v152, 0
        %v190 = vsel %vm161, %v153, 0
        %v193 = vsel %vm161, %v154, 0
        %v196 = vsel %vm161, %v155, 0
        %v199 = vsel %vm161, %v156, 0
        %v202 = vsel %vm161, %v157, 0
        %v205 = vsel %vm161, %v158, 0
        %v208 = vsel %vm161, %v159, 0
        %v211 = vsel %vm161, %v160, 0
        %213 = vmatprep.subr.mxu0 0.0
        %214 = vmatpush1.xpose.msra.mxu0 %v211
        %215 = vmatprep.subr.mxu0 0.0
        %216 = vmatpush1.xpose.msra.mxu0 %v208
        %217 = vmatprep.subr.mxu0 0.0
        %218 = vmatpush1.xpose.msra.mxu0 %v205
        %219 = vmatprep.subr.mxu0 0.0
        %220 = vmatpush1.xpose.msra.mxu0 %v202
        %221 = vmatprep.subr.mxu0 0.0
        %222 = vmatpush1.xpose.msra.mxu0 %v199
        %223 = vmatprep.subr.mxu0 0.0
        %224 = vmatpush1.xpose.msra.mxu0 %v196
        %225 = vmatprep.subr.mxu0 0.0
        %226 = vmatpush1.xpose.msra.mxu0 %v193
        %227 = vmatprep.subr.mxu0 0.0
        %228 = vmatpush1.xpose.msra.mxu0 %v190
        %229 = vmatprep.subr.mxu0 0.0
        %230 = vmatpush1.xpose.msra.mxu0 %v187
        %231 = vmatprep.subr.mxu0 0.0
        %232 = vmatpush1.xpose.msra.mxu0 %v184
        %233 = vmatprep.subr.mxu0 0.0
        %234 = vmatpush1.xpose.msra.mxu0 %v181
        %235 = vmatprep.subr.mxu0 0.0
        %236 = vmatpush1.xpose.msra.mxu0 %v178
        %237 = vmatprep.subr.mxu0 0.0
        %238 = vmatpush1.xpose.msra.mxu0 %v175
        %239 = vmatprep.subr.mxu0 0.0
        %240 = vmatpush1.xpose.msra.mxu0 %v172
        %241 = vmatprep.subr.mxu0 0.0
        %242 = vmatpush1.xpose.msra.mxu0 %v169
        %243 = vmatprep.subr.mxu0 0.0
        %244 = vmatpush1.xpose.msra.mxu0 %v166
        %245 = vmatprep.subr.mxu0 0.0
        %246 = vmatpush2.xpose.msra.mxu0 0.0
        %247 = vmatprep.subr.mxu0 0.0
        %248 = vmatpush2.xpose.msra.mxu0 0.0
        %249 = vmatprep.subr.mxu0 0.0
        %250 = vmatpush2.xpose.msra.mxu0 0.0
        %251 = vmatprep.subr.mxu0 0.0
        %252 = vmatpush2.xpose.msra.mxu0 0.0
        %253 = vmatprep.subr.mxu0 0.0
        %254 = vmatpush2.xpose.msra.mxu0 0.0
        %255 = vmatprep.subr.mxu0 0.0
        %256 = vmatpush2.xpose.msra.mxu0 0.0
        %257 = vmatprep.subr.mxu0 0.0
        %258 = vmatpush2.xpose.msra.mxu0 0.0
        %259 = vmatprep.subr.mxu0 0.0
        %260 = vmatpush2.xpose.msra.mxu0 0.0
        %261 = vmatprep.subr.mxu0 0.0
        %262 = vmatpush2.xpose.msra.mxu0 0.0
        %263 = vmatprep.subr.mxu0 0.0
        %264 = vmatpush2.xpose.msra.mxu0 0.0
        %265 = vmatprep.subr.mxu0 0.0
        %266 = vmatpush2.xpose.msra.mxu0 0.0
        %267 = vmatprep.subr.mxu0 0.0
        %268 = vmatpush2.xpose.msra.mxu0 0.0
        %269 = vmatprep.subr.mxu0 0.0
        %270 = vmatpush2.xpose.msra.mxu0 0.0
        %271 = vmatprep.subr.mxu0 0.0
        %272 = vmatpush2.xpose.msra.mxu0 0.0
        %273 = vmatprep.subr.mxu0 0.0
        %274 = vmatpush2.xpose.msra.mxu0 0.0
        %275 = vmatprep.subr.mxu0 0.0
        %276 = vmatpush2.xpose.msra.mxu0 0.0
        %277 = vmatprep.mubr.f32.mxu0 0.0
        %278 = vmatmul.mubr.f32.gmra.mxu0 %v163
        %v279 = vpop.f32.mrf.mxu0
        %v280 = vadd.f32 0.0, %v279
        %v281 = vpop.f32.mrf.mxu0
        %282 = vdwg.mxu0
        %283 = vst [vmem:[%s137] sm:$0xff] %v280
        %s284 = sand.u32 %s71, 1
        %s285 = scalar_lea.sflag [#allocation3], %s284
        %s286 = sand.u32 %s71, 1
        %s287 = smul.addr %s286, 8
        %s288 = scalar_lea.vmem [#allocation2], %s287
        // Predicated region
        $region29: #{tpu_custom_call.1} parent=27 // pred_check
          %p289 = pneg %p81
        $region30: #{tpu_custom_call.1} parent=27 // pred_check_branch
          %291 = sbr.rel (%p289) target = $region32
        $region31: #{tpu_custom_call.1} parent=27 // pred_region
          %s293 = ssub.s32 128, 128
          %294 = vsyncadd %s285, %s293
          %s295 = smul.addr %s16, 128
          %s296 = scalar_lea.hbm %s2, %s295
          %s298 = sshll.u32 %s288, 4
          %s299 = int_to_ptr.vmem [resolvable:$true] %s298
          %301 = dma.vmem_to_hbm [thread:$0]  %s299, 128, %s296, %s285
        $region32: #{tpu_custom_call.1} parent=27 // pred_fallthru
          _
      $region28: #{tpu_custom_call.1} parent=5 // pred_fallthru
        _
      %p302 = scmp.le.s32.totalorder 2, %s11
      // Predicated region
      $region33: #{tpu_custom_call.1} parent=5 // pred_check
        %p303 = pneg %p302
      $region34: #{tpu_custom_call.1} parent=5 // pred_check_branch
        %305 = sbr.rel (%p303) target = $region36
      $region35: #{tpu_custom_call.1} parent=5 // pred_region
        %s306 = ssub.s32 %s11, 2
        // Predicated region
        $region37: #{tpu_custom_call.1} parent=35 // pred_check
          %p307 = pneg %p87
        $region38: #{tpu_custom_call.1} parent=35 // pred_check_branch
          %309 = sbr.rel (%p307) target = $region40
        $region39: #{tpu_custom_call.1} parent=35 // pred_region
          %s310 = sand.u32 %s72, 1
          %s311 = scalar_lea.sflag [#allocation3], %s310
          %s312 = sand.u32 %s72, 1
          %s313 = smul.addr %s312, 8
          %s314 = scalar_lea.vmem [#allocation2], %s313
          %315 = dma.done %s311, 128
        $region40: #{tpu_custom_call.1} parent=35 // pred_fallthru
          _
      $region36: #{tpu_custom_call.1} parent=5 // pred_fallthru
        _
    $region6: #{tpu_custom_call.1} parent=1 // loop_footer
      %s15 = sadd.s32 1, %s11
    $region7: #{tpu_custom_call.1} parent=1 // loop_footer_branch
      %10 = sbr.rel target = $region3
    $region8: #{tpu_custom_call.1} parent=1 // loop_exit
      _
    %316 = vsyncpa [#allocation3], 1
    %s317 = scalar_lea.sflag [#allocation3], 1
    %318 = vsyncpa %s317, 1

</llo_original>
